<compile_context>
chip_gen: v6e
topology: v6e:2x2x1
jax: 0.10.0
libtpu: 0.0.40
codegen_flags: <defaults>
</compile_context>

<pallas_src>
import functools

import jax
import jax.numpy as jnp
from jax import lax
from jax.experimental import pallas as pl
from jax.experimental.pallas import tpu as pltpu


def make_kernel(k):
    """JAX equivalent of gpen_model.make_kernel."""
    k = jnp.asarray(k, jnp.float32)
    if k.ndim == 1:
        k = k[None, :] * k[:, None]
    return k / jnp.sum(k)


def _pad_crop_nchw(x, pad):
    """upfirdn2d-style spatial pad for up=down=1 (negative pad crops)."""
    p0, p1 = pad
    x = jnp.pad(x, ((0, 0), (0, 0),
                    (max(p0, 0), max(p1, 0)),
                    (max(p0, 0), max(p1, 0))))
    _, _, hp, wp = x.shape
    y0, y1 = max(-p0, 0), hp - max(-p1, 0)
    x0, x1 = max(-p0, 0), wp - max(-p1, 0)
    return x[:, :, y0:y1, x0:x1]


def _blur_kernel(kf_ref, x_ref, out_ref, *, kh, kw, out_h, out_w):
    """One batch element: depthwise 2-D FIR over all channels.

    kf_ref : (1, kh*kw) flipped FIR taps in SMEM (read as scalars)
    x_ref  : (1, C, Hp, Wp) zero-padded input tile in VMEM
    out_ref: (1, C, Ho, Wo) output tile
    """
    acc = jnp.zeros((x_ref.shape[1], out_h, out_w), jnp.float32)
    # kh*kw is small & static -> fully unrolled VPU multiply-adds; each tap is a
    # static VMEM window load (no MXU, no im2col, no HIGHEST-precision matmul).
    for i in range(kh):
        for j in range(kw):
            tap = kf_ref[0, i * kw + j]
            acc = acc + tap * x_ref[0, :, i:i + out_h, j:j + out_w]
    out_ref[0] = acc.astype(out_ref.dtype)


def blur_pallas(x, kernel_2d, pad, upsample_factor=1):
    """Blur.forward: upfirdn2d(x, kernel, up=1, down=1, pad=pad) in NCHW."""
    kf2 = kernel_2d
    if upsample_factor > 1:
        kf2 = kf2 * (upsample_factor ** 2)
    kh, kw = kf2.shape
    # F.conv2d is correlation; upfirdn2d flips the FIR kernel first -> true conv.
    kf = kf2[::-1, ::-1].reshape(1, kh * kw).astype(jnp.float32)

    xp = _pad_crop_nchw(x, pad).astype(jnp.float32)
    B, C, Hp, Wp = xp.shape
    Ho, Wo = Hp - kh + 1, Wp - kw + 1
    assert Ho > 0 and Wo > 0, (Ho, Wo)

    kernel = functools.partial(_blur_kernel, kh=kh, kw=kw, out_h=Ho, out_w=Wo)

    out = pl.pallas_call(
        kernel,
        grid=(B,),
        in_specs=[
            # FIR taps: tiny, scalar-indexed -> SMEM (no lane-sparse VMEM block).
            pl.BlockSpec((1, kh * kw), lambda b: (0, 0),
                         memory_space=pltpu.MemorySpace.SMEM),
            # Whole padded image (all channels) of one batch element per step.
            pl.BlockSpec((1, C, Hp, Wp), lambda b: (b, 0, 0, 0)),
        ],
        out_specs=pl.BlockSpec((1, C, Ho, Wo), lambda b: (b, 0, 0, 0)),
        out_shape=jax.ShapeDtypeStruct((B, C, Ho, Wo), x.dtype),
        compiler_params=pltpu.CompilerParams(
            dimension_semantics=("parallel",)),
    )(kf, xp)
    return out


def blur_ref(x, kernel_2d, pad, upsample_factor=1):
    """Pure-JAX reference mirroring upfirdn2d_native (up=1, down=1)."""
    kf2 = kernel_2d
    if upsample_factor > 1:
        kf2 = kf2 * (upsample_factor ** 2)
    kh, kw = kf2.shape
    kf = kf2[::-1, ::-1]
    xp = _pad_crop_nchw(x, pad)
    C = x.shape[1]
    w = jnp.tile(kf[None, None], (C, 1, 1, 1))        # (C, 1, kh, kw) depthwise
    return lax.conv_general_dilated(
        xp, w, window_strides=(1, 1), padding="VALID",
        dimension_numbers=("NCHW", "OIHW", "NCHW"),
        feature_group_count=C,
        precision=lax.Precision.HIGHEST)


if __name__ == "__main__":
    B, C, H, W = 2, 4, 16, 16
    pad = (2, 1)                       # canonical GPEN Blur pad for kernel [1,3,3,1]
    k2 = make_kernel([1, 3, 3, 1])     # 4x4 separable blur kernel, sums to 1

    key = jax.random.PRNGKey(0)
    x = jax.random.normal(key, (B, C, H, W), jnp.float32)

    out = blur_pallas(x, k2, pad)
    out = jax.block_until_ready(out)

    ref = blur_ref(x, k2, pad)
    assert out.shape == ref.shape == (B, C, H, W), (out.shape, ref.shape)
    err = float(jnp.max(jnp.abs(out - ref)))
    assert jnp.allclose(out, ref, rtol=1e-4, atol=1e-4), err

    print("KERNEL_OK")
</pallas_src>

<mosaic_0001>
module attributes {stable_mosaic.version = 11 : i64} {
  func.func @_blur_kernel(%arg0: i32, %arg1: memref<1x16xf32, #tpu.memory_space<smem>>, %arg2: memref<1x4x19x19xf32, #tpu.memory_space<vmem>>, %arg3: memref<1x4x16x16xf32, #tpu.memory_space<vmem>>) attributes {dimension_semantics = [#tpu.dimension_semantics<parallel>], iteration_bounds = array<i64: 2>, scalar_prefetch = 0 : i64, scratch_operands = 0 : i64, tpu.core_type = #tpu.core_type<tc>, window_params = [{transform_indices = @transform_0, window_bounds = array<i64: 1, 16>}, {transform_indices = @transform_1, window_bounds = array<i64: 1, 4, 19, 19>}, {transform_indices = @transform_2, window_bounds = array<i64: 1, 4, 16, 16>}]} {
    %cst = arith.constant 0.000000e+00 : f32
    %0 = vector.broadcast %cst : f32 to vector<4x16x16xf32>
    %c0 = arith.constant 0 : index
    %c0_0 = arith.constant 0 : index
    %1 = memref.load %arg1[%c0, %c0_0] : memref<1x16xf32, #tpu.memory_space<smem>>
    %c0_1 = arith.constant 0 : index
    %c0_2 = arith.constant 0 : index
    %c0_3 = arith.constant 0 : index
    %c0_4 = arith.constant 0 : index
    %2 = vector.load %arg2[%c0_1, %c0_2, %c0_3, %c0_4] : memref<1x4x19x19xf32, #tpu.memory_space<vmem>>, vector<1x4x16x16xf32>
    %3 = vector.shape_cast %2 : vector<1x4x16x16xf32> to vector<4x16x16xf32>
    %4 = vector.broadcast %1 : f32 to vector<4x16x16xf32>
    %5 = arith.mulf %4, %3 : vector<4x16x16xf32>
    %6 = arith.addf %0, %5 : vector<4x16x16xf32>
    %c0_5 = arith.constant 0 : index
    %c1 = arith.constant 1 : index
    %7 = memref.load %arg1[%c0_5, %c1] : memref<1x16xf32, #tpu.memory_space<smem>>
    %c0_6 = arith.constant 0 : index
    %c0_7 = arith.constant 0 : index
    %c0_8 = arith.constant 0 : index
    %c1_9 = arith.constant 1 : index
    %8 = vector.load %arg2[%c0_6, %c0_7, %c0_8, %c1_9] : memref<1x4x19x19xf32, #tpu.memory_space<vmem>>, vector<1x4x16x16xf32>
    %9 = vector.shape_cast %8 : vector<1x4x16x16xf32> to vector<4x16x16xf32>
    %10 = vector.broadcast %7 : f32 to vector<4x16x16xf32>
    %11 = arith.mulf %10, %9 : vector<4x16x16xf32>
    %12 = arith.addf %6, %11 : vector<4x16x16xf32>
    %c0_10 = arith.constant 0 : index
    %c2 = arith.constant 2 : index
    %13 = memref.load %arg1[%c0_10, %c2] : memref<1x16xf32, #tpu.memory_space<smem>>
    %c0_11 = arith.constant 0 : index
    %c0_12 = arith.constant 0 : index
    %c0_13 = arith.constant 0 : index
    %c2_14 = arith.constant 2 : index
    %14 = vector.load %arg2[%c0_11, %c0_12, %c0_13, %c2_14] : memref<1x4x19x19xf32, #tpu.memory_space<vmem>>, vector<1x4x16x16xf32>
    %15 = vector.shape_cast %14 : vector<1x4x16x16xf32> to vector<4x16x16xf32>
    %16 = vector.broadcast %13 : f32 to vector<4x16x16xf32>
    %17 = arith.mulf %16, %15 : vector<4x16x16xf32>
    %18 = arith.addf %12, %17 : vector<4x16x16xf32>
    %c0_15 = arith.constant 0 : index
    %c3 = arith.constant 3 : index
    %19 = memref.load %arg1[%c0_15, %c3] : memref<1x16xf32, #tpu.memory_space<smem>>
    %c0_16 = arith.constant 0 : index
    %c0_17 = arith.constant 0 : index
    %c0_18 = arith.constant 0 : index
    %c3_19 = arith.constant 3 : index
    %20 = vector.load %arg2[%c0_16, %c0_17, %c0_18, %c3_19] : memref<1x4x19x19xf32, #tpu.memory_space<vmem>>, vector<1x4x16x16xf32>
    %21 = vector.shape_cast %20 : vector<1x4x16x16xf32> to vector<4x16x16xf32>
    %22 = vector.broadcast %19 : f32 to vector<4x16x16xf32>
    %23 = arith.mulf %22, %21 : vector<4x16x16xf32>
    %24 = arith.addf %18, %23 : vector<4x16x16xf32>
    %c0_20 = arith.constant 0 : index
    %c4 = arith.constant 4 : index
    %25 = memref.load %arg1[%c0_20, %c4] : memref<1x16xf32, #tpu.memory_space<smem>>
    %c0_21 = arith.constant 0 : index
    %c0_22 = arith.constant 0 : index
    %c1_23 = arith.constant 1 : index
    %c0_24 = arith.constant 0 : index
    %26 = vector.load %arg2[%c0_21, %c0_22, %c1_23, %c0_24] : memref<1x4x19x19xf32, #tpu.memory_space<vmem>>, vector<1x4x16x16xf32>
    %27 = vector.shape_cast %26 : vector<1x4x16x16xf32> to vector<4x16x16xf32>
    %28 = vector.broadcast %25 : f32 to vector<4x16x16xf32>
    %29 = arith.mulf %28, %27 : vector<4x16x16xf32>
    %30 = arith.addf %24, %29 : vector<4x16x16xf32>
    %c0_25 = arith.constant 0 : index
    %c5 = arith.constant 5 : index
    %31 = memref.load %arg1[%c0_25, %c5] : memref<1x16xf32, #tpu.memory_space<smem>>
    %c0_26 = arith.constant 0 : index
    %c0_27 = arith.constant 0 : index
    %c1_28 = arith.constant 1 : index
    %c1_29 = arith.constant 1 : index
    %32 = vector.load %arg2[%c0_26, %c0_27, %c1_28, %c1_29] : memref<1x4x19x19xf32, #tpu.memory_space<vmem>>, vector<1x4x16x16xf32>
    %33 = vector.shape_cast %32 : vector<1x4x16x16xf32> to vector<4x16x16xf32>
    %34 = vector.broadcast %31 : f32 to vector<4x16x16xf32>
    %35 = arith.mulf %34, %33 : vector<4x16x16xf32>
    %36 = arith.addf %30, %35 : vector<4x16x16xf32>
    %c0_30 = arith.constant 0 : index
    %c6 = arith.constant 6 : index
    %37 = memref.load %arg1[%c0_30, %c6] : memref<1x16xf32, #tpu.memory_space<smem>>
    %c0_31 = arith.constant 0 : index
    %c0_32 = arith.constant 0 : index
    %c1_33 = arith.constant 1 : index
    %c2_34 = arith.constant 2 : index
    %38 = vector.load %arg2[%c0_31, %c0_32, %c1_33, %c2_34] : memref<1x4x19x19xf32, #tpu.memory_space<vmem>>, vector<1x4x16x16xf32>
    %39 = vector.shape_cast %38 : vector<1x4x16x16xf32> to vector<4x16x16xf32>
    %40 = vector.broadcast %37 : f32 to vector<4x16x16xf32>
    %41 = arith.mulf %40, %39 : vector<4x16x16xf32>
    %42 = arith.addf %36, %41 : vector<4x16x16xf32>
    %c0_35 = arith.constant 0 : index
    %c7 = arith.constant 7 : index
    %43 = memref.load %arg1[%c0_35, %c7] : memref<1x16xf32, #tpu.memory_space<smem>>
    %c0_36 = arith.constant 0 : index
    %c0_37 = arith.constant 0 : index
    %c1_38 = arith.constant 1 : index
    %c3_39 = arith.constant 3 : index
    %44 = vector.load %arg2[%c0_36, %c0_37, %c1_38, %c3_39] : memref<1x4x19x19xf32, #tpu.memory_space<vmem>>, vector<1x4x16x16xf32>
    %45 = vector.shape_cast %44 : vector<1x4x16x16xf32> to vector<4x16x16xf32>
    %46 = vector.broadcast %43 : f32 to vector<4x16x16xf32>
    %47 = arith.mulf %46, %45 : vector<4x16x16xf32>
    %48 = arith.addf %42, %47 : vector<4x16x16xf32>
    %c0_40 = arith.constant 0 : index
    %c8 = arith.constant 8 : index
    %49 = memref.load %arg1[%c0_40, %c8] : memref<1x16xf32, #tpu.memory_space<smem>>
    %c0_41 = arith.constant 0 : index
    %c0_42 = arith.constant 0 : index
    %c2_43 = arith.constant 2 : index
    %c0_44 = arith.constant 0 : index
    %50 = vector.load %arg2[%c0_41, %c0_42, %c2_43, %c0_44] : memref<1x4x19x19xf32, #tpu.memory_space<vmem>>, vector<1x4x16x16xf32>
    %51 = vector.shape_cast %50 : vector<1x4x16x16xf32> to vector<4x16x16xf32>
    %52 = vector.broadcast %49 : f32 to vector<4x16x16xf32>
    %53 = arith.mulf %52, %51 : vector<4x16x16xf32>
    %54 = arith.addf %48, %53 : vector<4x16x16xf32>
    %c0_45 = arith.constant 0 : index
    %c9 = arith.constant 9 : index
    %55 = memref.load %arg1[%c0_45, %c9] : memref<1x16xf32, #tpu.memory_space<smem>>
    %c0_46 = arith.constant 0 : index
    %c0_47 = arith.constant 0 : index
    %c2_48 = arith.constant 2 : index
    %c1_49 = arith.constant 1 : index
    %56 = vector.load %arg2[%c0_46, %c0_47, %c2_48, %c1_49] : memref<1x4x19x19xf32, #tpu.memory_space<vmem>>, vector<1x4x16x16xf32>
    %57 = vector.shape_cast %56 : vector<1x4x16x16xf32> to vector<4x16x16xf32>
    %58 = vector.broadcast %55 : f32 to vector<4x16x16xf32>
    %59 = arith.mulf %58, %57 : vector<4x16x16xf32>
    %60 = arith.addf %54, %59 : vector<4x16x16xf32>
    %c0_50 = arith.constant 0 : index
    %c10 = arith.constant 10 : index
    %61 = memref.load %arg1[%c0_50, %c10] : memref<1x16xf32, #tpu.memory_space<smem>>
    %c0_51 = arith.constant 0 : index
    %c0_52 = arith.constant 0 : index
    %c2_53 = arith.constant 2 : index
    %c2_54 = arith.constant 2 : index
    %62 = vector.load %arg2[%c0_51, %c0_52, %c2_53, %c2_54] : memref<1x4x19x19xf32, #tpu.memory_space<vmem>>, vector<1x4x16x16xf32>
    %63 = vector.shape_cast %62 : vector<1x4x16x16xf32> to vector<4x16x16xf32>
    %64 = vector.broadcast %61 : f32 to vector<4x16x16xf32>
    %65 = arith.mulf %64, %63 : vector<4x16x16xf32>
    %66 = arith.addf %60, %65 : vector<4x16x16xf32>
    %c0_55 = arith.constant 0 : index
    %c11 = arith.constant 11 : index
    %67 = memref.load %arg1[%c0_55, %c11] : memref<1x16xf32, #tpu.memory_space<smem>>
    %c0_56 = arith.constant 0 : index
    %c0_57 = arith.constant 0 : index
    %c2_58 = arith.constant 2 : index
    %c3_59 = arith.constant 3 : index
    %68 = vector.load %arg2[%c0_56, %c0_57, %c2_58, %c3_59] : memref<1x4x19x19xf32, #tpu.memory_space<vmem>>, vector<1x4x16x16xf32>
    %69 = vector.shape_cast %68 : vector<1x4x16x16xf32> to vector<4x16x16xf32>
    %70 = vector.broadcast %67 : f32 to vector<4x16x16xf32>
    %71 = arith.mulf %70, %69 : vector<4x16x16xf32>
    %72 = arith.addf %66, %71 : vector<4x16x16xf32>
    %c0_60 = arith.constant 0 : index
    %c12 = arith.constant 12 : index
    %73 = memref.load %arg1[%c0_60, %c12] : memref<1x16xf32, #tpu.memory_space<smem>>
    %c0_61 = arith.constant 0 : index
    %c0_62 = arith.constant 0 : index
    %c3_63 = arith.constant 3 : index
    %c0_64 = arith.constant 0 : index
    %74 = vector.load %arg2[%c0_61, %c0_62, %c3_63, %c0_64] : memref<1x4x19x19xf32, #tpu.memory_space<vmem>>, vector<1x4x16x16xf32>
    %75 = vector.shape_cast %74 : vector<1x4x16x16xf32> to vector<4x16x16xf32>
    %76 = vector.broadcast %73 : f32 to vector<4x16x16xf32>
    %77 = arith.mulf %76, %75 : vector<4x16x16xf32>
    %78 = arith.addf %72, %77 : vector<4x16x16xf32>
    %c0_65 = arith.constant 0 : index
    %c13 = arith.constant 13 : index
    %79 = memref.load %arg1[%c0_65, %c13] : memref<1x16xf32, #tpu.memory_space<smem>>
    %c0_66 = arith.constant 0 : index
    %c0_67 = arith.constant 0 : index
    %c3_68 = arith.constant 3 : index
    %c1_69 = arith.constant 1 : index
    %80 = vector.load %arg2[%c0_66, %c0_67, %c3_68, %c1_69] : memref<1x4x19x19xf32, #tpu.memory_space<vmem>>, vector<1x4x16x16xf32>
    %81 = vector.shape_cast %80 : vector<1x4x16x16xf32> to vector<4x16x16xf32>
    %82 = vector.broadcast %79 : f32 to vector<4x16x16xf32>
    %83 = arith.mulf %82, %81 : vector<4x16x16xf32>
    %84 = arith.addf %78, %83 : vector<4x16x16xf32>
    %c0_70 = arith.constant 0 : index
    %c14 = arith.constant 14 : index
    %85 = memref.load %arg1[%c0_70, %c14] : memref<1x16xf32, #tpu.memory_space<smem>>
    %c0_71 = arith.constant 0 : index
    %c0_72 = arith.constant 0 : index
    %c3_73 = arith.constant 3 : index
    %c2_74 = arith.constant 2 : index
    %86 = vector.load %arg2[%c0_71, %c0_72, %c3_73, %c2_74] : memref<1x4x19x19xf32, #tpu.memory_space<vmem>>, vector<1x4x16x16xf32>
    %87 = vector.shape_cast %86 : vector<1x4x16x16xf32> to vector<4x16x16xf32>
    %88 = vector.broadcast %85 : f32 to vector<4x16x16xf32>
    %89 = arith.mulf %88, %87 : vector<4x16x16xf32>
    %90 = arith.addf %84, %89 : vector<4x16x16xf32>
    %c0_75 = arith.constant 0 : index
    %c15 = arith.constant 15 : index
    %91 = memref.load %arg1[%c0_75, %c15] : memref<1x16xf32, #tpu.memory_space<smem>>
    %c0_76 = arith.constant 0 : index
    %c0_77 = arith.constant 0 : index
    %c3_78 = arith.constant 3 : index
    %c3_79 = arith.constant 3 : index
    %92 = vector.load %arg2[%c0_76, %c0_77, %c3_78, %c3_79] : memref<1x4x19x19xf32, #tpu.memory_space<vmem>>, vector<1x4x16x16xf32>
    %93 = vector.shape_cast %92 : vector<1x4x16x16xf32> to vector<4x16x16xf32>
    %94 = vector.broadcast %91 : f32 to vector<4x16x16xf32>
    %95 = arith.mulf %94, %93 : vector<4x16x16xf32>
    %96 = arith.addf %90, %95 : vector<4x16x16xf32>
    %c0_80 = arith.constant 0 : index
    %c0_81 = arith.constant 0 : index
    %c0_82 = arith.constant 0 : index
    %c0_83 = arith.constant 0 : index
    %97 = vector.load %arg3[%c0_80, %c0_81, %c0_82, %c0_83] : memref<1x4x16x16xf32, #tpu.memory_space<vmem>>, vector<1x4x16x16xf32>
    %98 = vector.shape_cast %97 : vector<1x4x16x16xf32> to vector<4x16x16xf32>
    %99 = vector.shape_cast %96 : vector<4x16x16xf32> to vector<1x4x16x16xf32>
    tpu.vector_store %arg3[%c0_80, %c0_81, %c0_82, %c0_83], %99 {strides = array<i32>} : memref<1x4x16x16xf32, #tpu.memory_space<vmem>>, vector<1x4x16x16xf32>,
    return
  }
  func.func @transform_0(%arg0: i32) -> (i32, i32) {
    %c0_i32 = arith.constant 0 : i32
    %c0_i32_0 = arith.constant 0 : i32
    %c0_i32_1 = arith.constant 0 : i32
    return %c0_i32, %c0_i32_0 : i32, i32
  }
  func.func @transform_1(%arg0: i32) -> (i32, i32, i32, i32) {
    %c0_i32 = arith.constant 0 : i32
    %c0_i32_0 = arith.constant 0 : i32
    %c0_i32_1 = arith.constant 0 : i32
    %c0_i32_2 = arith.constant 0 : i32
    return %arg0, %c0_i32, %c0_i32_0, %c0_i32_1 : i32, i32, i32, i32
  }
  func.func @transform_2(%arg0: i32) -> (i32, i32, i32, i32) {
    %c0_i32 = arith.constant 0 : i32
    %c0_i32_0 = arith.constant 0 : i32
    %c0_i32_1 = arith.constant 0 : i32
    %c0_i32_2 = arith.constant 0 : i32
    return %arg0, %c0_i32, %c0_i32_0, %c0_i32_1 : i32, i32, i32, i32
  }
}

</mosaic_0001>

<llo_original>
// kernel: tpu_custom_call.1
$region0: #{tpu_custom_call.1}
  #allocation0 [shape = 'u32[]', space=smem, size = 0x4, offset = 0x4, fixed_abs, tag = 'smem constant byte address 0x4 - core index']
  #allocation1 [shape = 'u32[144,128]{1,0:T(1,128)}', space=vmem, size = 0x12000, scoped, tag = 'internal scratch']
  %s0 = inlined_call_operand.vmem [shape: f32[1,16], index: 0, kind: input, shape index: {}]
  %s1 = inlined_call_operand.vmem [shape: f32[2,4,19,19], index: 1, kind: input, shape index: {}]
  %s2 = inlined_call_operand.hbm [shape: f32[2,4,16,16], index: 2, kind: output, shape index: {}]
  %s3 = sld [smem:[#allocation0]]
  $region45: #{tpu_custom_call.1} parent=0
    _
  %s5 = ssub.s32 1, %s3
  %s6 = scalar_select 0, %s5, %s3
  $region1: #{tpu_custom_call.1} parent=0
    #allocation2 [shape = 'u8[512]{0}', space=smem, size = 0x200, scoped, tag = 'input window, operand 0, single buffered']
    #allocation3 [shape = 's32[2]{0}', space=sflag, size = 0x8, scoped, tag = 'scoped memory for tpu_custom_call.1']
    #allocation4 [shape = 's32[2]{0}', space=sflag, size = 0x8, scoped, tag = 'scoped memory for tpu_custom_call.1']
    #allocation5 [shape = 'u8[65536]{0}', space=vmem, size = 0x10000, scoped, tag = 'output window, operand 0']
    %7 = vsyncpa [#allocation4], 0
    %8 = vsyncpa [#allocation3], 0
    %s9 = scalar_lea.sflag [#allocation3], 1
    %10 = vsyncpa %s9, 0
    loop: start=0, step=1, limit=4
    $region2: #{tpu_custom_call.1} parent=1 // loop_pre_header
      _
    $region3: #{tpu_custom_call.1} parent=1 // loop_header
      %s12 = sphi 0, %s16
      %p13 = scmp.ge.s32.totalorder %s12, 4
      %s20 = sphi 0, %s20
      %s22 = sphi 0, %s20
      %s23 = sphi 0, %s22
      %s37 = sphi 0, %s23
      %s43 = sphi 0, %s45
      %s46 = sphi 0, %s43
      %s47 = sphi 0, %s46
      %s63 = sphi 0, %s47
      %s69 = sphi 0, %s71
      %s72 = sphi 0, %s69
      %s73 = sphi 0, %s72
      %s89 = sphi 0, %s73
    $region4: #{tpu_custom_call.1} parent=1 // loop_header_branch
      %15 = sbr.rel (%p13) target = $region8
    $region5: #{tpu_custom_call.1} parent=1 // loop_body
      %s17 = ssub.s32 %s12, 1
      %s18 = ssub.s32 %s12, 2
      %s19 = sadd.s32 %s12, 1
      %s21 = sadd.s32 %s20, 1
      %p24 = scmp.eq.s32.totalorder %s12, 1
      %p25 = scmp.ne.s32.totalorder %s20, %s22
      %p26 = scmp.eq.s32.totalorder %s12, 0
      %p27 = por %p25, %p26
      %p28 = scmp.ne.s32.totalorder %s20, %s22
      %p29 = scmp.eq.s32.totalorder %s17, 1
      %p30 = por %p28, %p29
      %p31 = scmp.ne.s32.totalorder %s22, %s23
      %p32 = scmp.eq.s32.totalorder %s17, 0
      %p33 = por %p31, %p32
      %p34 = scmp.ne.s32.totalorder %s22, %s23
      %p35 = scmp.eq.s32.totalorder %s18, 1
      %p36 = por %p34, %p35
      %p38 = scmp.ne.s32.totalorder %s23, %s37
      %p39 = scmp.eq.s32.totalorder %s18, 0
      %p40 = por %p38, %p39
      %s41 = ssub.s32 %s12, %s19
      %p42 = scmp.eq.s32.totalorder %s41, 0
      %s44 = sadd.s32 %s43, 1
      %s45 = scalar_select %p42, %s43, %s44
      %p48 = pneg %p42
      %p49 = scmp.eq.s32.totalorder %s12, 1
      %p50 = por %p48, %p49
      %p51 = scmp.ne.s32.totalorder %s43, %s46
      %p52 = scmp.eq.s32.totalorder %s12, 0
      %p53 = por %p51, %p52
      %p54 = scmp.ne.s32.totalorder %s43, %s46
      %p55 = scmp.eq.s32.totalorder %s17, 1
      %p56 = por %p54, %p55
      %p57 = scmp.ne.s32.totalorder %s46, %s47
      %p58 = scmp.eq.s32.totalorder %s17, 0
      %p59 = por %p57, %p58
      %p60 = scmp.ne.s32.totalorder %s46, %s47
      %p61 = scmp.eq.s32.totalorder %s18, 1
      %p62 = por %p60, %p61
      %p64 = scmp.ne.s32.totalorder %s47, %s63
      %p65 = scmp.eq.s32.totalorder %s18, 0
      %p66 = por %p64, %p65
      %s67 = ssub.s32 %s12, %s19
      %p68 = scmp.eq.s32.totalorder %s67, 0
      %s70 = sadd.s32 %s69, 1
      %s71 = scalar_select %p68, %s69, %s70
      %p74 = pneg %p68
      %p75 = scmp.eq.s32.totalorder %s12, 1
      %p76 = por %p74, %p75
      %p77 = scmp.ne.s32.totalorder %s69, %s72
      %p78 = scmp.eq.s32.totalorder %s12, 0
      %p79 = por %p77, %p78
      %p80 = scmp.ne.s32.totalorder %s69, %s72
      %p81 = scmp.eq.s32.totalorder %s17, 1
      %p82 = por %p80, %p81
      %p83 = scmp.ne.s32.totalorder %s72, %s73
      %p84 = scmp.eq.s32.totalorder %s17, 0
      %p85 = por %p83, %p84
      %p86 = scmp.ne.s32.totalorder %s72, %s73
      %p87 = scmp.eq.s32.totalorder %s18, 1
      %p88 = por %p86, %p87
      %p90 = scmp.ne.s32.totalorder %s73, %s89
      %p91 = scmp.eq.s32.totalorder %s18, 0
      %p92 = por %p90, %p91
      %p93 = scmp.le.s32.totalorder 1, %s12
      %p94 = scmp.lt.s32.totalorder %s12, 3
      %p95 = pnand %p93, %p94
      %p96 = pneg %p95
      // Predicated region
      $region9: #{tpu_custom_call.1} parent=5 // pred_check
        _
      $region10: #{tpu_custom_call.1} parent=5 // pred_check_branch
        %98 = sbr.rel (%p95) target = $region12
      $region11: #{tpu_custom_call.1} parent=5 // pred_region
        %s99 = ssub.s32 %s12, 1
        // Predicated region
        $region13: #{tpu_custom_call.1} parent=11 // pred_check
          %p100 = pneg %p33
        $region14: #{tpu_custom_call.1} parent=11 // pred_check_branch
          %102 = sbr.rel (%p100) target = $region16
        $region15: #{tpu_custom_call.1} parent=11 // pred_region
          %s104 = ssub.s32 16, 16
          %105 = vsyncadd [#allocation4], %s104
          %s107 = sshll.u32 %s0, 4
          %s108 = int_to_ptr.vmem [resolvable:$true] %s107
          %110 = dma.vmem_to_smem %s108, 16, [#allocation2], [#allocation4]
        $region16: #{tpu_custom_call.1} parent=11 // pred_fallthru
          _
      $region12: #{tpu_custom_call.1} parent=5 // pred_fallthru
        _
      %p111 = scmp.lt.s32.totalorder %s12, 2
      // Predicated region
      $region17: #{tpu_custom_call.1} parent=5 // pred_check
        %p112 = pneg %p111
      $region18: #{tpu_custom_call.1} parent=5 // pred_check_branch
        %114 = sbr.rel (%p112) target = $region20
      $region19: #{tpu_custom_call.1} parent=5 // pred_region
        // Predicated region
        $region21: #{tpu_custom_call.1} parent=19 // pred_check
          %p115 = pneg %p53
        $region22: #{tpu_custom_call.1} parent=19 // pred_check_branch
          %117 = sbr.rel (%p115) target = $region24
        $region23: #{tpu_custom_call.1} parent=19 // pred_region
          %p118 = scmp.lt.s32.totalorder %s12, 1
          %s119 = scalar_select %p118, %s12, 1
          %s120 = smul.addr %s119, 12
          %s121 = smul.addr %s120, 8
          %s122 = scalar_lea.vmem %s1, %s121
        $region24: #{tpu_custom_call.1} parent=19 // pred_fallthru
          _
      $region20: #{tpu_custom_call.1} parent=5 // pred_fallthru
        _
      %p123 = scmp.le.s32.totalorder 1, %s12
      %p124 = scmp.lt.s32.totalorder %s12, 3
      %p125 = pnand %p123, %p124
      %p126 = pneg %p125
      // Predicated region
      $region25: #{tpu_custom_call.1} parent=5 // pred_check
        _
      $region26: #{tpu_custom_call.1} parent=5 // pred_check_branch
        %128 = sbr.rel (%p125) target = $region28
      $region27: #{tpu_custom_call.1} parent=5 // pred_region
        %s129 = ssub.s32 %s12, 1
        // Predicated region
        $region29: #{tpu_custom_call.1} parent=27 // pred_check
          %p130 = pneg %p33
        $region30: #{tpu_custom_call.1} parent=27 // pred_check_branch
          %132 = sbr.rel (%p130) target = $region32
        $region31: #{tpu_custom_call.1} parent=27 // pred_region
          %133 = dma.done [#allocation4], 16
        $region32: #{tpu_custom_call.1} parent=27 // pred_fallthru
          _
        %134 = sfence
        %p135 = pneg %p33
        %p136 = pneg %p30
        %p137 = scmp.lt.s32.totalorder %s17, 1
        %s138 = scalar_select %p137, %s17, 1
        %s139 = smul.addr %s138, 12
        %s140 = smul.addr %s139, 8
        %s141 = scalar_lea.vmem %s1, %s140
        %p142 = pneg %p59
        %p143 = pneg %p56
        %p144 = pneg %p85
        %p145 = pneg %p82
        %s146 = sand.u32 %s72, 1
        %s147 = scalar_lea.sflag [#allocation3], %s146
        %s148 = sand.u32 %s72, 1
        %s149 = smul.addr %s148, 64
        %s150 = scalar_lea.vmem [#allocation5], %s149
        %p151 = scmp.lt.s32.totalorder %s17, 1
        %s152 = scalar_select %p151, %s17, 1
        %s153 = smul.addr %s152, 12
        %s154 = smul.addr %s153, 8
        %s155 = scalar_lea.vmem %s1, %s154
        %s156 = sld [smem:[#allocation2]]
        %v157 = vld [vmem:[%s155] sm:$0xff]
        %v158 = vld [vmem:[%s155 + $0x8] sm:$0xff]
        %v159 = vld [vmem:[%s155 + $0x18] sm:$0xff]
        %v160 = vld [vmem:[%s155 + $0x20] sm:$0xff]
        %v161 = vld [vmem:[%s155 + $0x30] sm:$0xff]
        %v162 = vld [vmem:[%s155 + $0x38] sm:$0xff]
        %v163 = vld [vmem:[%s155 + $0x48] sm:$0xff]
        %v164 = vld [vmem:[%s155 + $0x50] sm:$0xff]
        %v165 = vstv %s156
        %v166 = vmul.f32 %v165, %v157
        %v167 = vmul.f32 %v165, %v158
        %v168 = vmul.f32 %v165, %v159
        %v169 = vmul.f32 %v165, %v160
        %v170 = vmul.f32 %v165, %v161
        %v171 = vmul.f32 %v165, %v162
        %v172 = vmul.f32 %v165, %v163
        %v173 = vmul.f32 %v165, %v164
        %v174 = vadd.f32 %v166, 0.0
        %v175 = vadd.f32 %v167, 0.0
        %v176 = vadd.f32 %v168, 0.0
        %v177 = vadd.f32 %v169, 0.0
        %v178 = vadd.f32 %v170, 0.0
        %v179 = vadd.f32 %v171, 0.0
        %v180 = vadd.f32 %v172, 0.0
        %v181 = vadd.f32 %v173, 0.0
        %s182 = sld [smem:[#allocation2 + $0x1]]
        %v183 = vstv %s182
        %v184 = vmul.f32 %v183, %v157
        %v185 = vmul.f32 %v183, %v158
        %v186 = vmul.f32 %v183, %v159
        %v187 = vmul.f32 %v183, %v160
        %v188 = vmul.f32 %v183, %v161
        %v189 = vmul.f32 %v183, %v162
        %v190 = vmul.f32 %v183, %v163
        %v191 = vmul.f32 %v183, %v164
        %200 = vrot.lane.b32.xlu0 %v184, 127
        %v201 = vpop.permute.xlu0 %200
        %202 = vrot.lane.b32.xlu0 %v185, 127
        %v203 = vpop.permute.xlu0 %202
        %204 = vrot.lane.b32.xlu0 %v186, 127
        %v205 = vpop.permute.xlu0 %204
        %206 = vrot.lane.b32.xlu0 %v187, 127
        %v207 = vpop.permute.xlu0 %206
        %208 = vrot.lane.b32.xlu0 %v188, 127
        %v209 = vpop.permute.xlu0 %208
        %210 = vrot.lane.b32.xlu0 %v189, 127
        %v211 = vpop.permute.xlu0 %210
        %212 = vrot.lane.b32.xlu0 %v190, 127
        %v213 = vpop.permute.xlu0 %212
        %214 = vrot.lane.b32.xlu0 %v191, 127
        %v215 = vpop.permute.xlu0 %214
        %v224 = vadd.f32 %v174, %v201
        %v225 = vadd.f32 %v175, %v203
        %v226 = vadd.f32 %v176, %v205
        %v227 = vadd.f32 %v177, %v207
        %v228 = vadd.f32 %v178, %v209
        %v229 = vadd.f32 %v179, %v211
        %v230 = vadd.f32 %v180, %v213
        %v231 = vadd.f32 %v181, %v215
        %s232 = sld [smem:[#allocation2 + $0x2]]
        %v233 = vstv %s232
        %v234 = vmul.f32 %v233, %v157
        %v235 = vmul.f32 %v233, %v158
        %v236 = vmul.f32 %v233, %v159
        %v237 = vmul.f32 %v233, %v160
        %v238 = vmul.f32 %v233, %v161
        %v239 = vmul.f32 %v233, %v162
        %v240 = vmul.f32 %v233, %v163
        %v241 = vmul.f32 %v233, %v164
        %250 = vrot.lane.b32.xlu0 %v234, 126
        %v251 = vpop.permute.xlu0 %250
        %252 = vrot.lane.b32.xlu0 %v235, 126
        %v253 = vpop.permute.xlu0 %252
        %254 = vrot.lane.b32.xlu0 %v236, 126
        %v255 = vpop.permute.xlu0 %254
        %256 = vrot.lane.b32.xlu0 %v237, 126
        %v257 = vpop.permute.xlu0 %256
        %258 = vrot.lane.b32.xlu0 %v238, 126
        %v259 = vpop.permute.xlu0 %258
        %260 = vrot.lane.b32.xlu0 %v239, 126
        %v261 = vpop.permute.xlu0 %260
        %262 = vrot.lane.b32.xlu0 %v240, 126
        %v263 = vpop.permute.xlu0 %262
        %264 = vrot.lane.b32.xlu0 %v241, 126
        %v265 = vpop.permute.xlu0 %264
        %v274 = vadd.f32 %v224, %v251
        %v275 = vadd.f32 %v225, %v253
        %v276 = vadd.f32 %v226, %v255
        %v277 = vadd.f32 %v227, %v257
        %v278 = vadd.f32 %v228, %v259
        %v279 = vadd.f32 %v229, %v261
        %v280 = vadd.f32 %v230, %v263
        %v281 = vadd.f32 %v231, %v265
        %s282 = sld [smem:[#allocation2 + $0x3]]
        %v283 = vstv %s282
        %v284 = vmul.f32 %v283, %v157
        %v285 = vmul.f32 %v283, %v158
        %v286 = vmul.f32 %v283, %v159
        %v287 = vmul.f32 %v283, %v160
        %v288 = vmul.f32 %v283, %v161
        %v289 = vmul.f32 %v283, %v162
        %v290 = vmul.f32 %v283, %v163
        %v291 = vmul.f32 %v283, %v164
        %300 = vrot.lane.b32.xlu0 %v284, 125
        %v301 = vpop.permute.xlu0 %300
        %302 = vrot.lane.b32.xlu0 %v285, 125
        %v303 = vpop.permute.xlu0 %302
        %304 = vrot.lane.b32.xlu0 %v286, 125
        %v305 = vpop.permute.xlu0 %304
        %306 = vrot.lane.b32.xlu0 %v287, 125
        %v307 = vpop.permute.xlu0 %306
        %308 = vrot.lane.b32.xlu0 %v288, 125
        %v309 = vpop.permute.xlu0 %308
        %310 = vrot.lane.b32.xlu0 %v289, 125
        %v311 = vpop.permute.xlu0 %310
        %312 = vrot.lane.b32.xlu0 %v290, 125
        %v313 = vpop.permute.xlu0 %312
        %314 = vrot.lane.b32.xlu0 %v291, 125
        %v315 = vpop.permute.xlu0 %314
        %v324 = vadd.f32 %v274, %v301
        %v325 = vadd.f32 %v275, %v303
        %v326 = vadd.f32 %v276, %v305
        %v327 = vadd.f32 %v277, %v307
        %v328 = vadd.f32 %v278, %v309
        %v329 = vadd.f32 %v279, %v311
        %v330 = vadd.f32 %v280, %v313
        %v331 = vadd.f32 %v281, %v315
        %s332 = sld [smem:[#allocation2 + $0x4]]
        %v333 = vld [vmem:[%s155 + $0x1] sm:$0xff]
        %v334 = vld [vmem:[%s155 + $0x9] sm:$0xff]
        %v335 = vld [vmem:[%s155 + $0x19] sm:$0xff]
        %v336 = vld [vmem:[%s155 + $0x21] sm:$0xff]
        %v337 = vld [vmem:[%s155 + $0x31] sm:$0xff]
        %v338 = vld [vmem:[%s155 + $0x39] sm:$0xff]
        %v339 = vld [vmem:[%s155 + $0x49] sm:$0xff]
        %v340 = vld [vmem:[%s155 + $0x51] sm:$0xff]
        %v341 = vstv %s332
        %v342 = vmul.f32 %v341, %v333
        %v343 = vmul.f32 %v341, %v334
        %v344 = vmul.f32 %v341, %v335
        %v345 = vmul.f32 %v341, %v336
        %v346 = vmul.f32 %v341, %v337
        %v347 = vmul.f32 %v341, %v338
        %v348 = vmul.f32 %v341, %v339
        %v349 = vmul.f32 %v341, %v340
        %v350 = vadd.f32 %v324, %v342
        %v351 = vadd.f32 %v325, %v343
        %v352 = vadd.f32 %v326, %v344
        %v353 = vadd.f32 %v327, %v345
        %v354 = vadd.f32 %v328, %v346
        %v355 = vadd.f32 %v329, %v347
        %v356 = vadd.f32 %v330, %v348
        %v357 = vadd.f32 %v331, %v349
        %s358 = sld [smem:[#allocation2 + $0x5]]
        %v359 = vstv %s358
        %v360 = vmul.f32 %v359, %v333
        %v361 = vmul.f32 %v359, %v334
        %v362 = vmul.f32 %v359, %v335
        %v363 = vmul.f32 %v359, %v336
        %v364 = vmul.f32 %v359, %v337
        %v365 = vmul.f32 %v359, %v338
        %v366 = vmul.f32 %v359, %v339
        %v367 = vmul.f32 %v359, %v340
        %376 = vrot.lane.b32.xlu0 %v360, 127
        %v377 = vpop.permute.xlu0 %376
        %378 = vrot.lane.b32.xlu0 %v361, 127
        %v379 = vpop.permute.xlu0 %378
        %380 = vrot.lane.b32.xlu0 %v362, 127
        %v381 = vpop.permute.xlu0 %380
        %382 = vrot.lane.b32.xlu0 %v363, 127
        %v383 = vpop.permute.xlu0 %382
        %384 = vrot.lane.b32.xlu0 %v364, 127
        %v385 = vpop.permute.xlu0 %384
        %386 = vrot.lane.b32.xlu0 %v365, 127
        %v387 = vpop.permute.xlu0 %386
        %388 = vrot.lane.b32.xlu0 %v366, 127
        %v389 = vpop.permute.xlu0 %388
        %390 = vrot.lane.b32.xlu0 %v367, 127
        %v391 = vpop.permute.xlu0 %390
        %v400 = vadd.f32 %v350, %v377
        %v401 = vadd.f32 %v351, %v379
        %v402 = vadd.f32 %v352, %v381
        %v403 = vadd.f32 %v353, %v383
        %v404 = vadd.f32 %v354, %v385
        %v405 = vadd.f32 %v355, %v387
        %v406 = vadd.f32 %v356, %v389
        %v407 = vadd.f32 %v357, %v391
        %s408 = sld [smem:[#allocation2 + $0x6]]
        %v409 = vstv %s408
        %v410 = vmul.f32 %v409, %v333
        %v411 = vmul.f32 %v409, %v334
        %v412 = vmul.f32 %v409, %v335
        %v413 = vmul.f32 %v409, %v336
        %v414 = vmul.f32 %v409, %v337
        %v415 = vmul.f32 %v409, %v338
        %v416 = vmul.f32 %v409, %v339
        %v417 = vmul.f32 %v409, %v340
        %426 = vrot.lane.b32.xlu0 %v410, 126
        %v427 = vpop.permute.xlu0 %426
        %428 = vrot.lane.b32.xlu0 %v411, 126
        %v429 = vpop.permute.xlu0 %428
        %430 = vrot.lane.b32.xlu0 %v412, 126
        %v431 = vpop.permute.xlu0 %430
        %432 = vrot.lane.b32.xlu0 %v413, 126
        %v433 = vpop.permute.xlu0 %432
        %434 = vrot.lane.b32.xlu0 %v414, 126
        %v435 = vpop.permute.xlu0 %434
        %436 = vrot.lane.b32.xlu0 %v415, 126
        %v437 = vpop.permute.xlu0 %436
        %438 = vrot.lane.b32.xlu0 %v416, 126
        %v439 = vpop.permute.xlu0 %438
        %440 = vrot.lane.b32.xlu0 %v417, 126
        %v441 = vpop.permute.xlu0 %440
        %v450 = vadd.f32 %v400, %v427
        %v451 = vadd.f32 %v401, %v429
        %v452 = vadd.f32 %v402, %v431
        %v453 = vadd.f32 %v403, %v433
        %v454 = vadd.f32 %v404, %v435
        %v455 = vadd.f32 %v405, %v437
        %v456 = vadd.f32 %v406, %v439
        %v457 = vadd.f32 %v407, %v441
        %s458 = sld [smem:[#allocation2 + $0x7]]
        %v459 = vstv %s458
        %v460 = vmul.f32 %v459, %v333
        %v461 = vmul.f32 %v459, %v334
        %v462 = vmul.f32 %v459, %v335
        %v463 = vmul.f32 %v459, %v336
        %v464 = vmul.f32 %v459, %v337
        %v465 = vmul.f32 %v459, %v338
        %v466 = vmul.f32 %v459, %v339
        %v467 = vmul.f32 %v459, %v340
        %476 = vrot.lane.b32.xlu0 %v460, 125
        %v477 = vpop.permute.xlu0 %476
        %478 = vrot.lane.b32.xlu0 %v461, 125
        %v479 = vpop.permute.xlu0 %478
        %480 = vrot.lane.b32.xlu0 %v462, 125
        %v481 = vpop.permute.xlu0 %480
        %482 = vrot.lane.b32.xlu0 %v463, 125
        %v483 = vpop.permute.xlu0 %482
        %484 = vrot.lane.b32.xlu0 %v464, 125
        %v485 = vpop.permute.xlu0 %484
        %486 = vrot.lane.b32.xlu0 %v465, 125
        %v487 = vpop.permute.xlu0 %486
        %488 = vrot.lane.b32.xlu0 %v466, 125
        %v489 = vpop.permute.xlu0 %488
        %490 = vrot.lane.b32.xlu0 %v467, 125
        %v491 = vpop.permute.xlu0 %490
        %v500 = vadd.f32 %v450, %v477
        %v501 = vadd.f32 %v451, %v479
        %v502 = vadd.f32 %v452, %v481
        %v503 = vadd.f32 %v453, %v483
        %v504 = vadd.f32 %v454, %v485
        %v505 = vadd.f32 %v455, %v487
        %v506 = vadd.f32 %v456, %v489
        %v507 = vadd.f32 %v457, %v491
        %s508 = sld [smem:[#allocation2 + $0x8]]
        %v509 = vld [vmem:[%s155 + $0x2] sm:$0xff]
        %v510 = vld [vmem:[%s155 + $0xa] sm:$0xff]
        %v511 = vld [vmem:[%s155 + $0x1a] sm:$0xff]
        %v512 = vld [vmem:[%s155 + $0x22] sm:$0xff]
        %v513 = vld [vmem:[%s155 + $0x32] sm:$0xff]
        %v514 = vld [vmem:[%s155 + $0x3a] sm:$0xff]
        %v515 = vld [vmem:[%s155 + $0x4a] sm:$0xff]
        %v516 = vld [vmem:[%s155 + $0x52] sm:$0xff]
        %v517 = vstv %s508
        %v518 = vmul.f32 %v517, %v509
        %v519 = vmul.f32 %v517, %v510
        %v520 = vmul.f32 %v517, %v511
        %v521 = vmul.f32 %v517, %v512
        %v522 = vmul.f32 %v517, %v513
        %v523 = vmul.f32 %v517, %v514
        %v524 = vmul.f32 %v517, %v515
        %v525 = vmul.f32 %v517, %v516
        %v526 = vadd.f32 %v500, %v518
        %v527 = vadd.f32 %v501, %v519
        %v528 = vadd.f32 %v502, %v520
        %v529 = vadd.f32 %v503, %v521
        %v530 = vadd.f32 %v504, %v522
        %v531 = vadd.f32 %v505, %v523
        %v532 = vadd.f32 %v506, %v524
        %v533 = vadd.f32 %v507, %v525
        %s534 = sld [smem:[#allocation2 + $0x9]]
        %v535 = vstv %s534
        %v536 = vmul.f32 %v535, %v509
        %v537 = vmul.f32 %v535, %v510
        %v538 = vmul.f32 %v535, %v511
        %v539 = vmul.f32 %v535, %v512
        %v540 = vmul.f32 %v535, %v513
        %v541 = vmul.f32 %v535, %v514
        %v542 = vmul.f32 %v535, %v515
        %v543 = vmul.f32 %v535, %v516
        %552 = vrot.lane.b32.xlu0 %v536, 127
        %v553 = vpop.permute.xlu0 %552
        %554 = vrot.lane.b32.xlu0 %v537, 127
        %v555 = vpop.permute.xlu0 %554
        %556 = vrot.lane.b32.xlu0 %v538, 127
        %v557 = vpop.permute.xlu0 %556
        %558 = vrot.lane.b32.xlu0 %v539, 127
        %v559 = vpop.permute.xlu0 %558
        %560 = vrot.lane.b32.xlu0 %v540, 127
        %v561 = vpop.permute.xlu0 %560
        %562 = vrot.lane.b32.xlu0 %v541, 127
        %v563 = vpop.permute.xlu0 %562
        %564 = vrot.lane.b32.xlu0 %v542, 127
        %v565 = vpop.permute.xlu0 %564
        %566 = vrot.lane.b32.xlu0 %v543, 127
        %v567 = vpop.permute.xlu0 %566
        %v576 = vadd.f32 %v526, %v553
        %v577 = vadd.f32 %v527, %v555
        %v578 = vadd.f32 %v528, %v557
        %v579 = vadd.f32 %v529, %v559
        %v580 = vadd.f32 %v530, %v561
        %v581 = vadd.f32 %v531, %v563
        %v582 = vadd.f32 %v532, %v565
        %v583 = vadd.f32 %v533, %v567
        %s584 = sld [smem:[#allocation2 + $0xa]]
        %v585 = vstv %s584
        %v586 = vmul.f32 %v585, %v509
        %v587 = vmul.f32 %v585, %v510
        %v588 = vmul.f32 %v585, %v511
        %v589 = vmul.f32 %v585, %v512
        %v590 = vmul.f32 %v585, %v513
        %v591 = vmul.f32 %v585, %v514
        %v592 = vmul.f32 %v585, %v515
        %v593 = vmul.f32 %v585, %v516
        %602 = vrot.lane.b32.xlu0 %v586, 126
        %v603 = vpop.permute.xlu0 %602
        %604 = vrot.lane.b32.xlu0 %v587, 126
        %v605 = vpop.permute.xlu0 %604
        %606 = vrot.lane.b32.xlu0 %v588, 126
        %v607 = vpop.permute.xlu0 %606
        %608 = vrot.lane.b32.xlu0 %v589, 126
        %v609 = vpop.permute.xlu0 %608
        %610 = vrot.lane.b32.xlu0 %v590, 126
        %v611 = vpop.permute.xlu0 %610
        %612 = vrot.lane.b32.xlu0 %v591, 126
        %v613 = vpop.permute.xlu0 %612
        %614 = vrot.lane.b32.xlu0 %v592, 126
        %v615 = vpop.permute.xlu0 %614
        %616 = vrot.lane.b32.xlu0 %v593, 126
        %v617 = vpop.permute.xlu0 %616
        %v626 = vadd.f32 %v576, %v603
        %v627 = vadd.f32 %v577, %v605
        %v628 = vadd.f32 %v578, %v607
        %v629 = vadd.f32 %v579, %v609
        %v630 = vadd.f32 %v580, %v611
        %v631 = vadd.f32 %v581, %v613
        %v632 = vadd.f32 %v582, %v615
        %v633 = vadd.f32 %v583, %v617
        %s634 = sld [smem:[#allocation2 + $0xb]]
        %v635 = vstv %s634
        %v636 = vmul.f32 %v635, %v509
        %v637 = vmul.f32 %v635, %v510
        %v638 = vmul.f32 %v635, %v511
        %v639 = vmul.f32 %v635, %v512
        %v640 = vmul.f32 %v635, %v513
        %v641 = vmul.f32 %v635, %v514
        %v642 = vmul.f32 %v635, %v515
        %v643 = vmul.f32 %v635, %v516
        %652 = vrot.lane.b32.xlu0 %v636, 125
        %v653 = vpop.permute.xlu0 %652
        %654 = vrot.lane.b32.xlu0 %v637, 125
        %v655 = vpop.permute.xlu0 %654
        %656 = vrot.lane.b32.xlu0 %v638, 125
        %v657 = vpop.permute.xlu0 %656
        %658 = vrot.lane.b32.xlu0 %v639, 125
        %v659 = vpop.permute.xlu0 %658
        %660 = vrot.lane.b32.xlu0 %v640, 125
        %v661 = vpop.permute.xlu0 %660
        %662 = vrot.lane.b32.xlu0 %v641, 125
        %v663 = vpop.permute.xlu0 %662
        %664 = vrot.lane.b32.xlu0 %v642, 125
        %v665 = vpop.permute.xlu0 %664
        %666 = vrot.lane.b32.xlu0 %v643, 125
        %v667 = vpop.permute.xlu0 %666
        %v676 = vadd.f32 %v626, %v653
        %v677 = vadd.f32 %v627, %v655
        %v678 = vadd.f32 %v628, %v657
        %v679 = vadd.f32 %v629, %v659
        %v680 = vadd.f32 %v630, %v661
        %v681 = vadd.f32 %v631, %v663
        %v682 = vadd.f32 %v632, %v665
        %v683 = vadd.f32 %v633, %v667
        %s684 = sld [smem:[#allocation2 + $0xc]]
        %v685 = vld [vmem:[%s155 + $0x3] sm:$0xff]
        %v686 = vld [vmem:[%s155 + $0xb] sm:$0xff]
        %v687 = vld [vmem:[%s155 + $0x1b] sm:$0xff]
        %v688 = vld [vmem:[%s155 + $0x23] sm:$0xff]
        %v689 = vld [vmem:[%s155 + $0x33] sm:$0xff]
        %v690 = vld [vmem:[%s155 + $0x3b] sm:$0xff]
        %v691 = vld [vmem:[%s155 + $0x4b] sm:$0xff]
        %v692 = vld [vmem:[%s155 + $0x53] sm:$0xff]
        %v693 = vstv %s684
        %v694 = vmul.f32 %v693, %v685
        %v695 = vmul.f32 %v693, %v686
        %v696 = vmul.f32 %v693, %v687
        %v697 = vmul.f32 %v693, %v688
        %v698 = vmul.f32 %v693, %v689
        %v699 = vmul.f32 %v693, %v690
        %v700 = vmul.f32 %v693, %v691
        %v701 = vmul.f32 %v693, %v692
        %v702 = vadd.f32 %v676, %v694
        %v703 = vadd.f32 %v677, %v695
        %v704 = vadd.f32 %v678, %v696
        %v705 = vadd.f32 %v679, %v697
        %v706 = vadd.f32 %v680, %v698
        %v707 = vadd.f32 %v681, %v699
        %v708 = vadd.f32 %v682, %v700
        %v709 = vadd.f32 %v683, %v701
        %s710 = sld [smem:[#allocation2 + $0xd]]
        %v711 = vstv %s710
        %v712 = vmul.f32 %v711, %v685
        %v713 = vmul.f32 %v711, %v686
        %v714 = vmul.f32 %v711, %v687
        %v715 = vmul.f32 %v711, %v688
        %v716 = vmul.f32 %v711, %v689
        %v717 = vmul.f32 %v711, %v690
        %v718 = vmul.f32 %v711, %v691
        %v719 = vmul.f32 %v711, %v692
        %728 = vrot.lane.b32.xlu0 %v712, 127
        %v729 = vpop.permute.xlu0 %728
        %730 = vrot.lane.b32.xlu0 %v713, 127
        %v731 = vpop.permute.xlu0 %730
        %732 = vrot.lane.b32.xlu0 %v714, 127
        %v733 = vpop.permute.xlu0 %732
        %734 = vrot.lane.b32.xlu0 %v715, 127
        %v735 = vpop.permute.xlu0 %734
        %736 = vrot.lane.b32.xlu0 %v716, 127
        %v737 = vpop.permute.xlu0 %736
        %738 = vrot.lane.b32.xlu0 %v717, 127
        %v739 = vpop.permute.xlu0 %738
        %740 = vrot.lane.b32.xlu0 %v718, 127
        %v741 = vpop.permute.xlu0 %740
        %742 = vrot.lane.b32.xlu0 %v719, 127
        %v743 = vpop.permute.xlu0 %742
        %v752 = vadd.f32 %v702, %v729
        %v753 = vadd.f32 %v703, %v731
        %v754 = vadd.f32 %v704, %v733
        %v755 = vadd.f32 %v705, %v735
        %v756 = vadd.f32 %v706, %v737
        %v757 = vadd.f32 %v707, %v739
        %v758 = vadd.f32 %v708, %v741
        %v759 = vadd.f32 %v709, %v743
        %s760 = sld [smem:[#allocation2 + $0xe]]
        %v761 = vstv %s760
        %v762 = vmul.f32 %v761, %v685
        %v763 = vmul.f32 %v761, %v686
        %v764 = vmul.f32 %v761, %v687
        %v765 = vmul.f32 %v761, %v688
        %v766 = vmul.f32 %v761, %v689
        %v767 = vmul.f32 %v761, %v690
        %v768 = vmul.f32 %v761, %v691
        %v769 = vmul.f32 %v761, %v692
        %778 = vrot.lane.b32.xlu0 %v762, 126
        %v779 = vpop.permute.xlu0 %778
        %780 = vrot.lane.b32.xlu0 %v763, 126
        %v781 = vpop.permute.xlu0 %780
        %782 = vrot.lane.b32.xlu0 %v764, 126
        %v783 = vpop.permute.xlu0 %782
        %784 = vrot.lane.b32.xlu0 %v765, 126
        %v785 = vpop.permute.xlu0 %784
        %786 = vrot.lane.b32.xlu0 %v766, 126
        %v787 = vpop.permute.xlu0 %786
        %788 = vrot.lane.b32.xlu0 %v767, 126
        %v789 = vpop.permute.xlu0 %788
        %790 = vrot.lane.b32.xlu0 %v768, 126
        %v791 = vpop.permute.xlu0 %790
        %792 = vrot.lane.b32.xlu0 %v769, 126
        %v793 = vpop.permute.xlu0 %792
        %v802 = vadd.f32 %v752, %v779
        %v803 = vadd.f32 %v753, %v781
        %v804 = vadd.f32 %v754, %v783
        %v805 = vadd.f32 %v755, %v785
        %v806 = vadd.f32 %v756, %v787
        %v807 = vadd.f32 %v757, %v789
        %v808 = vadd.f32 %v758, %v791
        %v809 = vadd.f32 %v759, %v793
        %s810 = sld [smem:[#allocation2 + $0xf]]
        %v811 = vstv %s810
        %v812 = vmul.f32 %v811, %v685
        %v813 = vmul.f32 %v811, %v686
        %v814 = vmul.f32 %v811, %v687
        %v815 = vmul.f32 %v811, %v688
        %v816 = vmul.f32 %v811, %v689
        %v817 = vmul.f32 %v811, %v690
        %v818 = vmul.f32 %v811, %v691
        %v819 = vmul.f32 %v811, %v692
        %828 = vrot.lane.b32.xlu0 %v812, 125
        %v829 = vpop.permute.xlu0 %828
        %830 = vrot.lane.b32.xlu0 %v813, 125
        %v831 = vpop.permute.xlu0 %830
        %832 = vrot.lane.b32.xlu0 %v814, 125
        %v833 = vpop.permute.xlu0 %832
        %834 = vrot.lane.b32.xlu0 %v815, 125
        %v835 = vpop.permute.xlu0 %834
        %836 = vrot.lane.b32.xlu0 %v816, 125
        %v837 = vpop.permute.xlu0 %836
        %838 = vrot.lane.b32.xlu0 %v817, 125
        %v839 = vpop.permute.xlu0 %838
        %840 = vrot.lane.b32.xlu0 %v818, 125
        %v841 = vpop.permute.xlu0 %840
        %842 = vrot.lane.b32.xlu0 %v819, 125
        %v843 = vpop.permute.xlu0 %842
        %v852 = vadd.f32 %v802, %v829
        %v853 = vadd.f32 %v803, %v831
        %v854 = vadd.f32 %v804, %v833
        %v855 = vadd.f32 %v805, %v835
        %v856 = vadd.f32 %v806, %v837
        %v857 = vadd.f32 %v807, %v839
        %v858 = vadd.f32 %v808, %v841
        %v859 = vadd.f32 %v809, %v843
        %vm860 = vcmask 130048
        %861 = vst.msk [vmem:[%s150] sm:$0xff] %vm860, %v852
        %862 = vst.msk [vmem:[%s150 + $0x8] sm:$0xff] %vm860, %v853
        %863 = vst.msk [vmem:[%s150 + $0x10] sm:$0xff] %vm860, %v854
        %864 = vst.msk [vmem:[%s150 + $0x18] sm:$0xff] %vm860, %v855
        %865 = vst.msk [vmem:[%s150 + $0x20] sm:$0xff] %vm860, %v856
        %866 = vst.msk [vmem:[%s150 + $0x28] sm:$0xff] %vm860, %v857
        %867 = vst.msk [vmem:[%s150 + $0x30] sm:$0xff] %vm860, %v858
        %868 = vst.msk [vmem:[%s150 + $0x38] sm:$0xff] %vm860, %v859
        %s869 = sand.u32 %s72, 1
        %s870 = scalar_lea.sflag [#allocation3], %s869
        %s871 = sand.u32 %s72, 1
        %s872 = smul.addr %s871, 64
        %s873 = scalar_lea.vmem [#allocation5], %s872
        // Predicated region
        $region33: #{tpu_custom_call.1} parent=27 // pred_check
          %p874 = pneg %p82
        $region34: #{tpu_custom_call.1} parent=27 // pred_check_branch
          %876 = sbr.rel (%p874) target = $region36
        $region35: #{tpu_custom_call.1} parent=27 // pred_region
          %s878 = ssub.s32 1024, 1024
          %879 = vsyncadd %s870, %s878
          %s880 = smul.addr %s17, 8
          %s881 = smul.addr %s880, 128
          %s882 = scalar_lea.hbm %s2, %s881
          %s883 = sshll.u32 %s873, 4
          %s884 = int_to_ptr.vmem [resolvable:$true] %s883
          %889 = dma.vmem_to_hbm [thread:$0]  %s884, 1024, %s882, %s870, 128, 128, 8
        $region36: #{tpu_custom_call.1} parent=27 // pred_fallthru
          _
      $region28: #{tpu_custom_call.1} parent=5 // pred_fallthru
        _
      %p890 = scmp.le.s32.totalorder 2, %s12
      // Predicated region
      $region37: #{tpu_custom_call.1} parent=5 // pred_check
        %p891 = pneg %p890
      $region38: #{tpu_custom_call.1} parent=5 // pred_check_branch
        %893 = sbr.rel (%p891) target = $region40
      $region39: #{tpu_custom_call.1} parent=5 // pred_region
        %s894 = ssub.s32 %s12, 2
        // Predicated region
        $region41: #{tpu_custom_call.1} parent=39 // pred_check
          %p895 = pneg %p88
        $region42: #{tpu_custom_call.1} parent=39 // pred_check_branch
          %897 = sbr.rel (%p895) target = $region44
        $region43: #{tpu_custom_call.1} parent=39 // pred_region
          %s898 = sand.u32 %s73, 1
          %s899 = scalar_lea.sflag [#allocation3], %s898
          %s900 = sand.u32 %s73, 1
          %s901 = smul.addr %s900, 64
          %s902 = scalar_lea.vmem [#allocation5], %s901
          %903 = dma.done %s899, 1024
        $region44: #{tpu_custom_call.1} parent=39 // pred_fallthru
          _
      $region40: #{tpu_custom_call.1} parent=5 // pred_fallthru
        _
    $region6: #{tpu_custom_call.1} parent=1 // loop_footer
      %s16 = sadd.s32 1, %s12
    $region7: #{tpu_custom_call.1} parent=1 // loop_footer_branch
      %11 = sbr.rel target = $region3
    $region8: #{tpu_custom_call.1} parent=1 // loop_exit
      _
    %904 = vsyncpa [#allocation3], 1
    %s905 = scalar_lea.sflag [#allocation3], 1
    %906 = vsyncpa %s905, 1
    %907 = vsyncpa [#allocation4], 1
    %s908 = scalar_lea.sflag [#allocation4], 1
    %909 = vsyncpa %s908, 1

</llo_original>
